<compile_context>
chip_gen: v6e
topology: v6e:2x2x1
jax: 0.10.0
libtpu: 0.0.40
codegen_flags: <defaults>
</compile_context>

<pallas_src>
import numpy as np
import jax
import jax.numpy as jnp
from jax.experimental import pallas as pl
from jax.experimental.pallas import tpu as pltpu


# ----------------------------------------------------------------------------
# Kernel: Bt stacked, row-padded images per grid step.
#   x_ref   : (1, Mb, W*Cin)     bf16  Mb = Bt*(H+2), stacked padded images
#   a1_ref  : (3, W*Cin, W*Cout) bf16  banded conv1 weights (BN1 folded)
#   b1_ref  : (1, W*Cout)        f32   folded conv1 bias, tiled over w
#   a2_ref  : (3, W*Cout, W*Cout)bf16  banded conv2 weights (BN2 folded)
#   b2_ref  : (1, W*Cout)        f32   folded conv2 bias, tiled over w
#   o_ref   : (Bt, H, W*Cout)    f32
#   h1p_ref : (Mb, W*Cout)       f32   scratch: row-padded intermediate stack
# ----------------------------------------------------------------------------
def _double_conv_kernel(x_ref, a1_ref, b1_ref, a2_ref, b2_ref, o_ref, h1p_ref):
    Bt, H, N = o_ref.shape                     # N = W * Cout
    Hp = H + 2
    Mb = x_ref.shape[1]                        # Bt * Hp
    M = Mb - 2                                 # rows carrying conv outputs

    xb = x_ref[0]                              # (Mb, W*Cin) bf16, no casts

    # ---- conv1 (+ folded BN1): one full-stack matmul per kernel row kh;
    #      height taps realized by shifting the f32 results ----
    acc = jnp.dot(xb, a1_ref[0], preferred_element_type=jnp.float32)[0:M]
    acc = acc + jnp.dot(xb, a1_ref[1], preferred_element_type=jnp.float32)[1:1 + M]
    acc = acc + jnp.dot(xb, a1_ref[2], preferred_element_type=jnp.float32)[2:2 + M]
    h1 = jnp.maximum(acc + b1_ref[...], 0.0)   # (M, N) f32

    # ---- rebuild the row-padded stack for conv2 in VMEM scratch ----
    # scratch row s = padded row s of the stack; valid rows at s = b*Hp + 1 + r
    h1p_ref[1:1 + M, :] = h1
    zrow = jnp.zeros((1, N), jnp.float32)
    zrow2 = jnp.zeros((2, N), jnp.float32)
    h1p_ref[0:1, :] = zrow
    for b in range(1, Bt):                     # zero per-image boundary pads
        h1p_ref[b * Hp - 1:b * Hp + 1, :] = zrow2
    h1p_ref[Mb - 1:Mb, :] = zrow

    hb = h1p_ref[...].astype(jnp.bfloat16)     # single bf16 cast (was 3x)

    # ---- conv2 (+ folded BN2) + ReLU ----
    acc2 = jnp.dot(hb, a2_ref[0], preferred_element_type=jnp.float32)[0:M]
    acc2 = acc2 + jnp.dot(hb, a2_ref[1], preferred_element_type=jnp.float32)[1:1 + M]
    acc2 = acc2 + jnp.dot(hb, a2_ref[2], preferred_element_type=jnp.float32)[2:2 + M]
    out2 = jnp.maximum(acc2 + b2_ref[...], 0.0)  # (M, N) f32

    # ---- write the H valid rows of each image (stack rows b*Hp .. b*Hp+H-1)
    for b in range(Bt):
        o_ref[b] = out2[b * Hp:b * Hp + H].astype(o_ref.dtype)


# ----------------------------------------------------------------------------
# Host-side weight lowering (done once, reused across calls).
# ----------------------------------------------------------------------------
def _band_conv_weights(wf, W):
    """wf: (3, 3, Cin, Cout) folded weights -> (3, W*Cin, W*Cout) banded matrices.

    A[kh, (w+kw-1)*Cin + ci, w*Cout + co] = wf[kh, kw, ci, co]; width zero
    padding handled by clipping (entries outside [0, W) stay zero).
    """
    wf = np.asarray(wf, dtype=np.float32)
    K, _, Cin, Cout = wf.shape
    A = np.zeros((K, W * Cin, W * Cout), np.float32)
    for kh in range(K):
        for kw in range(K):
            for w in range(W):
                src = w + kw - 1
                if 0 <= src < W:
                    A[kh, src * Cin:(src + 1) * Cin, w * Cout:(w + 1) * Cout] = wf[kh, kw]
    return jnp.asarray(A)


def lower_params(params, W, eps=1e-5):
    """Fold eval-mode BN into the convs and lower 3x3 convs to banded matmuls."""
    s1 = params["gamma1"] / jnp.sqrt(params["var1"] + eps)
    w1f = params["w1"] * s1
    b1f = (params["b1"] - params["mean1"]) * s1 + params["beta1"]
    s2 = params["gamma2"] / jnp.sqrt(params["var2"] + eps)
    w2f = params["w2"] * s2
    b2f = (params["b2"] - params["mean2"]) * s2 + params["beta2"]

    Cout = w1f.shape[-1]
    A1 = _band_conv_weights(w1f, W).astype(jnp.bfloat16)
    A2 = _band_conv_weights(w2f, W).astype(jnp.bfloat16)
    b1t = jnp.tile(b1f, (W,)).reshape(1, W * Cout).astype(jnp.float32)
    b2t = jnp.tile(b2f, (W,)).reshape(1, W * Cout).astype(jnp.float32)
    return A1, b1t, A2, b2t


# ----------------------------------------------------------------------------
# Wrapper
# ----------------------------------------------------------------------------
def _pick_block_images(B, target):
    bt = 1
    for d in range(1, min(B, target) + 1):
        if B % d == 0:
            bt = d
    return bt


def double_conv2d_bn_pallas(x, lowered, block_images=8):
    """x: (B, H, W, Cin) f32 NHWC (transpose from NCHW at the model boundary)."""
    A1, b1t, A2, b2t = lowered
    B, H, W, Cin = x.shape
    N = A2.shape[-1]                       # W * Cout
    Cout = N // W
    Hp = H + 2
    Bt = _pick_block_images(B, block_images)
    G = B // Bt
    Mb = Bt * Hp
    WC1 = W * Cin

    # bf16 activation path; height pad baked here (width padding lives in the
    # banded weights); images grouped so each grid step sees Bt stacked images.
    xp = jnp.pad(x.astype(jnp.bfloat16), ((0, 0), (1, 1), (0, 0), (0, 0)))
    xp = xp.reshape(G, Mb, WC1)

    # Effective conv FLOPs (not banded-matrix FLOPs).
    flops = 2 * B * H * W * 9 * (Cin * Cout + Cout * Cout)
    bytes_accessed = (xp.size * 2 + A1.size * 2 + A2.size * 2
                      + (b1t.size + b2t.size) * 4 + B * H * N * 4)

    out = pl.pallas_call(
        _double_conv_kernel,
        out_shape=jax.ShapeDtypeStruct((B, H, N), jnp.float32),
        grid_spec=pltpu.PrefetchScalarGridSpec(
            num_scalar_prefetch=0,
            grid=(G,),
            in_specs=[
                pl.BlockSpec((1, Mb, WC1), lambda g: (g, 0, 0)),        # pipelined activations
                pl.BlockSpec((3, WC1, N), lambda g: (0, 0, 0)),         # resident weights
                pl.BlockSpec((1, N), lambda g: (0, 0)),
                pl.BlockSpec((3, N, N), lambda g: (0, 0, 0)),
                pl.BlockSpec((1, N), lambda g: (0, 0)),
            ],
            out_specs=pl.BlockSpec((Bt, H, N), lambda g: (g, 0, 0)),
            scratch_shapes=[pltpu.VMEM((Mb, N), jnp.float32)],
        ),
        compiler_params=pltpu.CompilerParams(
            dimension_semantics=("parallel",),      # megacore batch split on v7x
            vmem_limit_bytes=32 * 1024 * 1024,
        ),
        cost_estimate=pl.CostEstimate(flops=int(flops), transcendentals=0,
                                      bytes_accessed=int(bytes_accessed)),
    )(xp, A1, b1t, A2, b2t)

    return out.reshape(B, H, W, Cout)


# ----------------------------------------------------------------------------
# Deterministic synthetic parameters + pure-JAX reference
# ----------------------------------------------------------------------------
def make_params(key, cin, cout, k=3):
    ks = jax.random.split(key, 12)

    def conv(kw_, kb_, fan_in_c):
        bound = 1.0 / float(np.sqrt(fan_in_c * k * k))
        w = jax.random.uniform(kw_, (k, k, fan_in_c, cout), jnp.float32, -bound, bound)
        b = jax.random.uniform(kb_, (cout,), jnp.float32, -bound, bound)
        return w, b

    def bn(kg, kb, km, kv):
        gamma = 1.0 + 0.1 * jax.random.normal(kg, (cout,), jnp.float32)
        beta = 0.1 * jax.random.normal(kb, (cout,), jnp.float32)
        mean = 0.1 * jax.random.normal(km, (cout,), jnp.float32)
        var = jax.random.uniform(kv, (cout,), jnp.float32, 0.5, 1.5)
        return gamma, beta, mean, var

    w1, b1 = conv(ks[0], ks[1], cin)
    w2, b2 = conv(ks[2], ks[3], cout)
    g1, be1, m1, v1 = bn(ks[4], ks[5], ks[6], ks[7])
    g2, be2, m2, v2 = bn(ks[8], ks[9], ks[10], ks[11])
    return dict(w1=w1, b1=b1, gamma1=g1, beta1=be1, mean1=m1, var1=v1,
                w2=w2, b2=b2, gamma2=g2, beta2=be2, mean2=m2, var2=v2)


def double_conv2d_bn_ref(x, p, eps=1e-5):
    def block(x, w, b, g, be, m, v):
        y = jax.lax.conv_general_dilated(
            x, w, window_strides=(1, 1), padding=((1, 1), (1, 1)),
            dimension_numbers=("NHWC", "HWIO", "NHWC"))
        y = (y + b - m) / jnp.sqrt(v + eps) * g + be
        return jnp.maximum(y, 0.0)

    h = block(x, p["w1"], p["b1"], p["gamma1"], p["beta1"], p["mean1"], p["var1"])
    return block(h, p["w2"], p["b2"], p["gamma2"], p["beta2"], p["mean2"], p["var2"])


if __name__ == "__main__":
    # small shapes consistent with the module: B=2, Cin=4, Cout=8, 16x16 spatial
    B, Cin, Cout, H, W = 2, 4, 8, 16, 16
    key = jax.random.PRNGKey(0)
    kx, kp = jax.random.split(key)

    x = jax.random.normal(kx, (B, H, W, Cin), jnp.float32)   # NHWC (TPU-native)
    params = make_params(kp, Cin, Cout)

    lowered = lower_params(params, W)
    out = double_conv2d_bn_pallas(x, lowered)
    out = jax.block_until_ready(out)

    ref = double_conv2d_bn_ref(x, params)
    assert out.shape == (B, H, W, Cout)
    max_err = float(jnp.max(jnp.abs(out - ref)))
    assert jnp.allclose(out, ref, atol=5e-2, rtol=5e-2), max_err  # bf16 matmul / f32 acc tolerance

    print("KERNEL_OK")
</pallas_src>

<mosaic_0001>
module attributes {stable_mosaic.version = 11 : i64} {
  func.func @_double_conv_kernel(%arg0: i32, %arg1: memref<1x36x64xbf16, #tpu.memory_space<vmem>>, %arg2: memref<3x64x128xbf16, #tpu.memory_space<vmem>>, %arg3: memref<1x128xf32, #tpu.memory_space<vmem>>, %arg4: memref<3x128x128xbf16, #tpu.memory_space<vmem>>, %arg5: memref<1x128xf32, #tpu.memory_space<vmem>>, %arg6: memref<2x16x128xf32, #tpu.memory_space<vmem>>, %arg7: memref<36x128xf32, #tpu.memory_space<vmem>>) attributes {dimension_semantics = [#tpu.dimension_semantics<parallel>], iteration_bounds = array<i64: 1>, scalar_prefetch = 0 : i64, scratch_operands = 1 : i64, tpu.core_type = #tpu.core_type<tc>, window_params = [{transform_indices = @transform_0, window_bounds = array<i64: 1, 36, 64>}, {pipeline_mode = #tpu.pipeline_mode<synchronous>, transform_indices = @transform_1, window_bounds = array<i64: 3, 64, 128>}, {pipeline_mode = #tpu.pipeline_mode<synchronous>, transform_indices = @transform_2, window_bounds = array<i64: 1, 128>}, {pipeline_mode = #tpu.pipeline_mode<synchronous>, transform_indices = @transform_3, window_bounds = array<i64: 3, 128, 128>}, {pipeline_mode = #tpu.pipeline_mode<synchronous>, transform_indices = @transform_4, window_bounds = array<i64: 1, 128>}, {transform_indices = @transform_5, window_bounds = array<i64: 2, 16, 128>}]} {
    %c0 = arith.constant 0 : index
    %c0_0 = arith.constant 0 : index
    %c0_1 = arith.constant 0 : index
    %0 = vector.load %arg1[%c0, %c0_0, %c0_1] : memref<1x36x64xbf16, #tpu.memory_space<vmem>>, vector<1x36x64xbf16>
    %1 = vector.shape_cast %0 : vector<1x36x64xbf16> to vector<36x64xbf16>
    %c0_2 = arith.constant 0 : index
    %c0_3 = arith.constant 0 : index
    %c0_4 = arith.constant 0 : index
    %2 = vector.load %arg2[%c0_2, %c0_3, %c0_4] : memref<3x64x128xbf16, #tpu.memory_space<vmem>>, vector<1x64x128xbf16>
    %3 = vector.shape_cast %2 : vector<1x64x128xbf16> to vector<64x128xbf16>
    %cst = arith.constant dense<0.000000e+00> : vector<36x128xf32>
    %4 = tpu.matmul %1, %3, %cst {dimension_numbers = #tpu.dot_dimension_numbers<[1], [0], [0], [1], [0, 0, 1, 1], [], []>} : vector<36x64xbf16>, vector<64x128xbf16>, vector<36x128xf32> -> vector<36x128xf32>
    %5 = vector.extract_strided_slice %4 {offsets = [0, 0], sizes = [34, 128], strides = [1, 1]} : vector<36x128xf32> to vector<34x128xf32>
    %c1 = arith.constant 1 : index
    %c0_5 = arith.constant 0 : index
    %c0_6 = arith.constant 0 : index
    %6 = vector.load %arg2[%c1, %c0_5, %c0_6] : memref<3x64x128xbf16, #tpu.memory_space<vmem>>, vector<1x64x128xbf16>
    %7 = vector.shape_cast %6 : vector<1x64x128xbf16> to vector<64x128xbf16>
    %cst_7 = arith.constant dense<0.000000e+00> : vector<36x128xf32>
    %8 = tpu.matmul %1, %7, %cst_7 {dimension_numbers = #tpu.dot_dimension_numbers<[1], [0], [0], [1], [0, 0, 1, 1], [], []>} : vector<36x64xbf16>, vector<64x128xbf16>, vector<36x128xf32> -> vector<36x128xf32>
    %9 = vector.extract_strided_slice %8 {offsets = [1, 0], sizes = [34, 128], strides = [1, 1]} : vector<36x128xf32> to vector<34x128xf32>
    %10 = arith.addf %5, %9 : vector<34x128xf32>
    %c2 = arith.constant 2 : index
    %c0_8 = arith.constant 0 : index
    %c0_9 = arith.constant 0 : index
    %11 = vector.load %arg2[%c2, %c0_8, %c0_9] : memref<3x64x128xbf16, #tpu.memory_space<vmem>>, vector<1x64x128xbf16>
    %12 = vector.shape_cast %11 : vector<1x64x128xbf16> to vector<64x128xbf16>
    %cst_10 = arith.constant dense<0.000000e+00> : vector<36x128xf32>
    %13 = tpu.matmul %1, %12, %cst_10 {dimension_numbers = #tpu.dot_dimension_numbers<[1], [0], [0], [1], [0, 0, 1, 1], [], []>} : vector<36x64xbf16>, vector<64x128xbf16>, vector<36x128xf32> -> vector<36x128xf32>
    %14 = vector.extract_strided_slice %13 {offsets = [2, 0], sizes = [34, 128], strides = [1, 1]} : vector<36x128xf32> to vector<34x128xf32>
    %15 = arith.addf %10, %14 : vector<34x128xf32>
    %c0_11 = arith.constant 0 : index
    %c0_12 = arith.constant 0 : index
    %16 = vector.load %arg3[%c0_11, %c0_12] : memref<1x128xf32, #tpu.memory_space<vmem>>, vector<1x128xf32>
    %17 = vector.broadcast %16 : vector<1x128xf32> to vector<34x128xf32>
    %18 = arith.addf %15, %17 : vector<34x128xf32>
    %cst_13 = arith.constant 0.000000e+00 : f32
    %19 = vector.broadcast %cst_13 : f32 to vector<34x128xf32>
    %20 = arith.maximumf %18, %19 : vector<34x128xf32>
    %c1_14 = arith.constant 1 : index
    %c0_15 = arith.constant 0 : index
    %21 = vector.load %arg7[%c1_14, %c0_15] : memref<36x128xf32, #tpu.memory_space<vmem>>, vector<34x128xf32>
    tpu.vector_store %arg7[%c1_14, %c0_15], %20 {strides = array<i32>} : memref<36x128xf32, #tpu.memory_space<vmem>>, vector<34x128xf32>,
    %cst_16 = arith.constant 0.000000e+00 : f32
    %22 = vector.broadcast %cst_16 : f32 to vector<1x128xf32>
    %cst_17 = arith.constant 0.000000e+00 : f32
    %23 = vector.broadcast %cst_17 : f32 to vector<2x128xf32>
    %c0_18 = arith.constant 0 : index
    %c0_19 = arith.constant 0 : index
    %24 = vector.load %arg7[%c0_18, %c0_19] : memref<36x128xf32, #tpu.memory_space<vmem>>, vector<1x128xf32>
    tpu.vector_store %arg7[%c0_18, %c0_19], %22 {strides = array<i32>} : memref<36x128xf32, #tpu.memory_space<vmem>>, vector<1x128xf32>,
    %c17 = arith.constant 17 : index
    %c0_20 = arith.constant 0 : index
    %25 = vector.load %arg7[%c17, %c0_20] : memref<36x128xf32, #tpu.memory_space<vmem>>, vector<2x128xf32>
    tpu.vector_store %arg7[%c17, %c0_20], %23 {strides = array<i32>} : memref<36x128xf32, #tpu.memory_space<vmem>>, vector<2x128xf32>,
    %c35 = arith.constant 35 : index
    %c0_21 = arith.constant 0 : index
    %26 = vector.load %arg7[%c35, %c0_21] : memref<36x128xf32, #tpu.memory_space<vmem>>, vector<1x128xf32>
    tpu.vector_store %arg7[%c35, %c0_21], %22 {strides = array<i32>} : memref<36x128xf32, #tpu.memory_space<vmem>>, vector<1x128xf32>,
    %c0_22 = arith.constant 0 : index
    %c0_23 = arith.constant 0 : index
    %27 = vector.load %arg7[%c0_22, %c0_23] : memref<36x128xf32, #tpu.memory_space<vmem>>, vector<36x128xf32>
    %28 = arith.truncf %27 : vector<36x128xf32> to vector<36x128xbf16>
    %c0_24 = arith.constant 0 : index
    %c0_25 = arith.constant 0 : index
    %c0_26 = arith.constant 0 : index
    %29 = vector.load %arg4[%c0_24, %c0_25, %c0_26] : memref<3x128x128xbf16, #tpu.memory_space<vmem>>, vector<1x128x128xbf16>
    %30 = vector.shape_cast %29 : vector<1x128x128xbf16> to vector<128x128xbf16>
    %cst_27 = arith.constant dense<0.000000e+00> : vector<36x128xf32>
    %31 = tpu.matmul %28, %30, %cst_27 {dimension_numbers = #tpu.dot_dimension_numbers<[1], [0], [0], [1], [0, 0, 1, 1], [], []>} : vector<36x128xbf16>, vector<128x128xbf16>, vector<36x128xf32> -> vector<36x128xf32>
    %32 = vector.extract_strided_slice %31 {offsets = [0, 0], sizes = [34, 128], strides = [1, 1]} : vector<36x128xf32> to vector<34x128xf32>
    %c1_28 = arith.constant 1 : index
    %c0_29 = arith.constant 0 : index
    %c0_30 = arith.constant 0 : index
    %33 = vector.load %arg4[%c1_28, %c0_29, %c0_30] : memref<3x128x128xbf16, #tpu.memory_space<vmem>>, vector<1x128x128xbf16>
    %34 = vector.shape_cast %33 : vector<1x128x128xbf16> to vector<128x128xbf16>
    %cst_31 = arith.constant dense<0.000000e+00> : vector<36x128xf32>
    %35 = tpu.matmul %28, %34, %cst_31 {dimension_numbers = #tpu.dot_dimension_numbers<[1], [0], [0], [1], [0, 0, 1, 1], [], []>} : vector<36x128xbf16>, vector<128x128xbf16>, vector<36x128xf32> -> vector<36x128xf32>
    %36 = vector.extract_strided_slice %35 {offsets = [1, 0], sizes = [34, 128], strides = [1, 1]} : vector<36x128xf32> to vector<34x128xf32>
    %37 = arith.addf %32, %36 : vector<34x128xf32>
    %c2_32 = arith.constant 2 : index
    %c0_33 = arith.constant 0 : index
    %c0_34 = arith.constant 0 : index
    %38 = vector.load %arg4[%c2_32, %c0_33, %c0_34] : memref<3x128x128xbf16, #tpu.memory_space<vmem>>, vector<1x128x128xbf16>
    %39 = vector.shape_cast %38 : vector<1x128x128xbf16> to vector<128x128xbf16>
    %cst_35 = arith.constant dense<0.000000e+00> : vector<36x128xf32>
    %40 = tpu.matmul %28, %39, %cst_35 {dimension_numbers = #tpu.dot_dimension_numbers<[1], [0], [0], [1], [0, 0, 1, 1], [], []>} : vector<36x128xbf16>, vector<128x128xbf16>, vector<36x128xf32> -> vector<36x128xf32>
    %41 = vector.extract_strided_slice %40 {offsets = [2, 0], sizes = [34, 128], strides = [1, 1]} : vector<36x128xf32> to vector<34x128xf32>
    %42 = arith.addf %37, %41 : vector<34x128xf32>
    %c0_36 = arith.constant 0 : index
    %c0_37 = arith.constant 0 : index
    %43 = vector.load %arg5[%c0_36, %c0_37] : memref<1x128xf32, #tpu.memory_space<vmem>>, vector<1x128xf32>
    %44 = vector.broadcast %43 : vector<1x128xf32> to vector<34x128xf32>
    %45 = arith.addf %42, %44 : vector<34x128xf32>
    %cst_38 = arith.constant 0.000000e+00 : f32
    %46 = vector.broadcast %cst_38 : f32 to vector<34x128xf32>
    %47 = arith.maximumf %45, %46 : vector<34x128xf32>
    %48 = vector.extract_strided_slice %47 {offsets = [0, 0], sizes = [16, 128], strides = [1, 1]} : vector<34x128xf32> to vector<16x128xf32>
    %c0_39 = arith.constant 0 : index
    %c0_40 = arith.constant 0 : index
    %c0_41 = arith.constant 0 : index
    %49 = vector.load %arg6[%c0_39, %c0_40, %c0_41] : memref<2x16x128xf32, #tpu.memory_space<vmem>>, vector<1x16x128xf32>
    %50 = vector.shape_cast %49 : vector<1x16x128xf32> to vector<16x128xf32>
    %51 = vector.shape_cast %48 : vector<16x128xf32> to vector<1x16x128xf32>
    tpu.vector_store %arg6[%c0_39, %c0_40, %c0_41], %51 {strides = array<i32>} : memref<2x16x128xf32, #tpu.memory_space<vmem>>, vector<1x16x128xf32>,
    %52 = vector.extract_strided_slice %47 {offsets = [18, 0], sizes = [16, 128], strides = [1, 1]} : vector<34x128xf32> to vector<16x128xf32>
    %c1_42 = arith.constant 1 : index
    %c0_43 = arith.constant 0 : index
    %c0_44 = arith.constant 0 : index
    %53 = vector.load %arg6[%c1_42, %c0_43, %c0_44] : memref<2x16x128xf32, #tpu.memory_space<vmem>>, vector<1x16x128xf32>
    %54 = vector.shape_cast %53 : vector<1x16x128xf32> to vector<16x128xf32>
    %55 = vector.shape_cast %52 : vector<16x128xf32> to vector<1x16x128xf32>
    tpu.vector_store %arg6[%c1_42, %c0_43, %c0_44], %55 {strides = array<i32>} : memref<2x16x128xf32, #tpu.memory_space<vmem>>, vector<1x16x128xf32>,
    return
  }
  func.func @transform_0(%arg0: i32) -> (i32, i32, i32) {
    %c0_i32 = arith.constant 0 : i32
    %c0_i32_0 = arith.constant 0 : i32
    %c0_i32_1 = arith.constant 0 : i32
    return %arg0, %c0_i32, %c0_i32_0 : i32, i32, i32
  }
  func.func @transform_1(%arg0: i32) -> (i32, i32, i32) {
    %c0_i32 = arith.constant 0 : i32
    %c0_i32_0 = arith.constant 0 : i32
    %c0_i32_1 = arith.constant 0 : i32
    %c0_i32_2 = arith.constant 0 : i32
    return %c0_i32, %c0_i32_0, %c0_i32_1 : i32, i32, i32
  }
  func.func @transform_2(%arg0: i32) -> (i32, i32) {
    %c0_i32 = arith.constant 0 : i32
    %c0_i32_0 = arith.constant 0 : i32
    %c0_i32_1 = arith.constant 0 : i32
    return %c0_i32, %c0_i32_0 : i32, i32
  }
  func.func @transform_3(%arg0: i32) -> (i32, i32, i32) {
    %c0_i32 = arith.constant 0 : i32
    %c0_i32_0 = arith.constant 0 : i32
    %c0_i32_1 = arith.constant 0 : i32
    %c0_i32_2 = arith.constant 0 : i32
    return %c0_i32, %c0_i32_0, %c0_i32_1 : i32, i32, i32
  }
  func.func @transform_4(%arg0: i32) -> (i32, i32) {
    %c0_i32 = arith.constant 0 : i32
    %c0_i32_0 = arith.constant 0 : i32
    %c0_i32_1 = arith.constant 0 : i32
    return %c0_i32, %c0_i32_0 : i32, i32
  }
  func.func @transform_5(%arg0: i32) -> (i32, i32, i32) {
    %c0_i32 = arith.constant 0 : i32
    %c0_i32_0 = arith.constant 0 : i32
    %c0_i32_1 = arith.constant 0 : i32
    return %arg0, %c0_i32, %c0_i32_0 : i32, i32, i32
  }
}

</mosaic_0001>

<llo_original>
// kernel: tpu_custom_call.1
$region0: #{tpu_custom_call.1}
  #allocation0 [shape = 'u32[]', space=smem, size = 0x4, offset = 0x4, fixed_abs, tag = 'smem constant byte address 0x4 - core index']
  #allocation1 [shape = 'u32[144,128]{1,0:T(1,128)}', space=vmem, size = 0x12000, scoped, tag = 'internal scratch']
  #allocation2 [shape = 'f32[36,128]{1,0:T(8,128)}', space=vmem, size = 0x5000, scoped, tag = 'scratch operand']
  %s0 = inlined_call_operand.hbm [shape: bf16[1,36,64], index: 0, kind: input, shape index: {}]
  %s1 = inlined_call_operand.hbm [shape: bf16[3,64,128], index: 1, kind: input, shape index: {}]
  %s2 = inlined_call_operand.vmem [shape: f32[1,128], index: 2, kind: input, shape index: {}]
  %s3 = inlined_call_operand.hbm [shape: bf16[3,128,128], index: 3, kind: input, shape index: {}]
  %s4 = inlined_call_operand.vmem [shape: f32[1,128], index: 4, kind: input, shape index: {}]
  %s5 = inlined_call_operand.hbm [shape: f32[2,16,128], index: 5, kind: output, shape index: {}]
  %s6 = sld [smem:[#allocation0]]
  $region42: #{tpu_custom_call.1} parent=0
    _
  %s8 = ssub.s32 1, %s6
  %s9 = scalar_select 0, %s8, %s6
  $region1: #{tpu_custom_call.1} parent=0
    #allocation3 [shape = 'u8[10240]{0}', space=vmem, size = 0x2800, scoped, tag = 'input window, operand 0, single buffered']
    #allocation4 [shape = 's32[1]{0}', space=sflag, size = 0x4, scoped, tag = 'scoped memory for tpu_custom_call.1']
    #allocation5 [shape = 's32[1]{0}', space=sflag, size = 0x4, scoped, tag = 'scoped memory for tpu_custom_call.1']
    #allocation6 [shape = 'u8[49152]{0}', space=vmem, size = 0xc000, scoped, tag = 'input window, operand 1, single buffered']
    #allocation7 [shape = 's32[1]{0}', space=sflag, size = 0x4, scoped, tag = 'scoped memory for tpu_custom_call.1']
    #allocation8 [shape = 'u8[98304]{0}', space=vmem, size = 0x18000, scoped, tag = 'input window, operand 3, single buffered']
    #allocation9 [shape = 'u8[16384]{0}', space=vmem, size = 0x4000, scoped, tag = 'output window, operand 0, single buffered']
    %10 = vsyncpa [#allocation4], 0
    %11 = vsyncpa [#allocation7], 0
    %12 = vsyncpa [#allocation5], 0
    // Predicated region
    $region2: #{tpu_custom_call.1} parent=1 // pred_check
      _
    $region3: #{tpu_custom_call.1} parent=1 // pred_check_branch
      %14 = sbr.rel (0) target = $region5
    $region4: #{tpu_custom_call.1} parent=1 // pred_region
      %s16 = ssub.s32 320, 320
      %17 = vsyncadd [#allocation4], %s16
      %s18 = sshll.u32 [#allocation3], 4
      %s19 = int_to_ptr.vmem [resolvable:$true] %s18
      %24 = dma.hbm_to_vmem [thread:$0]  %s0, 320, %s19, [#allocation4], 64, 64, 4
    $region5: #{tpu_custom_call.1} parent=1 // pred_fallthru
      _
    // Predicated region
    $region6: #{tpu_custom_call.1} parent=1 // pred_check
      _
    $region7: #{tpu_custom_call.1} parent=1 // pred_check_branch
      %26 = sbr.rel (0) target = $region9
    $region8: #{tpu_custom_call.1} parent=1 // pred_region
      %s28 = ssub.s32 1536, 1536
      %29 = vsyncadd [#allocation7], %s28
      %s30 = sshll.u32 [#allocation6], 4
      %s31 = int_to_ptr.vmem [resolvable:$true] %s30
      %36 = dma.hbm_to_vmem [thread:$0]  %s1, 1536, %s31, [#allocation7], 64, 64, 4
    $region9: #{tpu_custom_call.1} parent=1 // pred_fallthru
      _
    // Predicated region
    $region10: #{tpu_custom_call.1} parent=1 // pred_check
      _
    $region11: #{tpu_custom_call.1} parent=1 // pred_check_branch
      %38 = sbr.rel (0) target = $region13
    $region12: #{tpu_custom_call.1} parent=1 // pred_region
      _
    $region13: #{tpu_custom_call.1} parent=1 // pred_fallthru
      _
    // Predicated region
    $region14: #{tpu_custom_call.1} parent=1 // pred_check
      _
    $region15: #{tpu_custom_call.1} parent=1 // pred_check_branch
      %40 = sbr.rel (0) target = $region17
    $region16: #{tpu_custom_call.1} parent=1 // pred_region
      %s42 = ssub.s32 3072, 3072
      %43 = vsyncadd [#allocation7], %s42
      %s44 = sshll.u32 [#allocation8], 4
      %s45 = int_to_ptr.vmem [resolvable:$true] %s44
      %50 = dma.hbm_to_vmem [thread:$0]  %s3, 3072, %s45, [#allocation7], 64, 64, 4
    $region17: #{tpu_custom_call.1} parent=1 // pred_fallthru
      _
    // Predicated region
    $region18: #{tpu_custom_call.1} parent=1 // pred_check
      _
    $region19: #{tpu_custom_call.1} parent=1 // pred_check_branch
      %52 = sbr.rel (0) target = $region21
    $region20: #{tpu_custom_call.1} parent=1 // pred_region
      _
    $region21: #{tpu_custom_call.1} parent=1 // pred_fallthru
      _
    // Predicated region
    $region22: #{tpu_custom_call.1} parent=1 // pred_check
      _
    $region23: #{tpu_custom_call.1} parent=1 // pred_check_branch
      %54 = sbr.rel (0) target = $region25
    $region24: #{tpu_custom_call.1} parent=1 // pred_region
      %55 = dma.done [#allocation4], 320
    $region25: #{tpu_custom_call.1} parent=1 // pred_fallthru
      _
    // Predicated region
    $region26: #{tpu_custom_call.1} parent=1 // pred_check
      _
    $region27: #{tpu_custom_call.1} parent=1 // pred_check_branch
      %57 = sbr.rel (0) target = $region29
    $region28: #{tpu_custom_call.1} parent=1 // pred_region
      %58 = dma.done [#allocation7], 1536
    $region29: #{tpu_custom_call.1} parent=1 // pred_fallthru
      _
    // Predicated region
    $region30: #{tpu_custom_call.1} parent=1 // pred_check
      _
    $region31: #{tpu_custom_call.1} parent=1 // pred_check_branch
      %60 = sbr.rel (0) target = $region33
    $region32: #{tpu_custom_call.1} parent=1 // pred_region
      %61 = dma.done [#allocation7], 3072
    $region33: #{tpu_custom_call.1} parent=1 // pred_fallthru
      _
    %v63 = vld [vmem:[#allocation3] sm:$0xf]
    %v64 = vld [vmem:[#allocation3 + $0x4] sm:$0xf]
    %v65 = vld [vmem:[#allocation3 + $0x8] sm:$0xf]
    %v66 = vld [vmem:[#allocation3 + $0xc] sm:$0xf]
    %v67 = vld [vmem:[#allocation3 + $0x10] sm:$0x3]
    %v68 = vld [vmem:[#allocation6] sm:$0xf]
    %v69 = vld [vmem:[#allocation6 + $0x4] sm:$0xf]
    %v70 = vld [vmem:[#allocation6 + $0x8] sm:$0xf]
    %v71 = vld [vmem:[#allocation6 + $0xc] sm:$0xf]
    %v72 = vld [vmem:[#allocation6 + $0x10] sm:$0xf]
    %v73 = vld [vmem:[#allocation6 + $0x14] sm:$0xf]
    %v74 = vld [vmem:[#allocation6 + $0x18] sm:$0xf]
    %v75 = vld [vmem:[#allocation6 + $0x1c] sm:$0xf]
    %v81 = vunpack.c.l.b16 %v63
    %v82 = vunpack.c.l.b16 %v64
    %v83 = vunpack.c.l.b16 %v65
    %v84 = vunpack.c.l.b16 %v66
    %v85 = vunpack.c.l.b16 %v67
    %v86 = vpack.c.b16 %v82, %v81
    %v87 = vpack.c.b16 %v84, %v83
    %v88 = vpack.c.b16 %v85, %v85
    %v97 = vunpack.c.l.b16 %v68
    %v98 = vunpack.c.l.b16 %v69
    %v99 = vunpack.c.l.b16 %v70
    %v100 = vunpack.c.l.b16 %v71
    %v101 = vunpack.c.l.b16 %v72
    %v102 = vunpack.c.l.b16 %v73
    %v103 = vunpack.c.l.b16 %v74
    %v104 = vunpack.c.l.b16 %v75
    %v105 = vpack.c.b16 %v98, %v97
    %v106 = vpack.c.b16 %v100, %v99
    %v107 = vpack.c.b16 %v102, %v101
    %v108 = vpack.c.b16 %v104, %v103
    %vm113 = vcmask 523264
    %v115 = vsel %vm113, %v86, 0
    %v118 = vsel %vm113, %v87, 0
    %v121 = vsel %vm113, %v88, 0
    %123 = vmatprep.subr.bf16.mxu0 0
    %124 = vmatpush1.bf16.msra.mxu0 0
    %125 = vmatprep.subr.bf16.mxu0 0
    %126 = vmatpush1.bf16.msra.mxu0 0
    %127 = vmatprep.subr.bf16.mxu0 0
    %128 = vmatpush1.bf16.msra.mxu0 0
    %129 = vmatprep.subr.bf16.mxu0 0
    %130 = vmatpush1.bf16.msra.mxu0 0
    %131 = vmatprep.subr.bf16.mxu0 0
    %132 = vmatpush1.bf16.msra.mxu0 %v108
    %133 = vmatprep.subr.bf16.mxu0 0
    %134 = vmatpush1.bf16.msra.mxu0 %v107
    %135 = vmatprep.subr.bf16.mxu0 0
    %136 = vmatpush1.bf16.msra.mxu0 %v106
    %137 = vmatprep.subr.bf16.mxu0 0
    %138 = vmatpush1.bf16.msra.mxu0 %v105
    %139 = vmatprep.subr.bf16.mxu0 0
    %140 = vmatpush2.bf16.msra.mxu0 0
    %141 = vmatprep.subr.bf16.mxu0 0
    %142 = vmatpush2.bf16.msra.mxu0 0
    %143 = vmatprep.subr.bf16.mxu0 0
    %144 = vmatpush2.bf16.msra.mxu0 0
    %145 = vmatprep.subr.bf16.mxu0 0
    %146 = vmatpush2.bf16.msra.mxu0 0
    %147 = vmatprep.subr.bf16.mxu0 0
    %148 = vmatpush2.bf16.msra.mxu0 0
    %149 = vmatprep.subr.bf16.mxu0 0
    %150 = vmatpush2.bf16.msra.mxu0 0
    %151 = vmatprep.subr.bf16.mxu0 0
    %152 = vmatpush2.bf16.msra.mxu0 0
    %153 = vmatprep.subr.bf16.mxu0 0
    %154 = vmatpush2.bf16.msra.mxu0 0
    %155 = vmatprep.mubr.bf16.mxu0 0
    %156 = vmatmul.mubr.bf16.gmra.mxu0 %v115
    %v157 = vpop.f32.mrf.mxu0
    %v158 = vadd.f32 0.0, %v157
    %v159 = vpop.f32.mrf.mxu0
    %v160 = vpop.f32.mrf.mxu0
    %v161 = vadd.f32 0.0, %v160
    %v162 = vpop.f32.mrf.mxu0
    %163 = vmatprep.mubr.bf16.mxu0 0
    %164 = vmatmul.mubr.bf16.gmra.mxu0 %v118
    %v165 = vpop.f32.mrf.mxu0
    %v166 = vadd.f32 0.0, %v165
    %v167 = vpop.f32.mrf.mxu0
    %v168 = vpop.f32.mrf.mxu0
    %v169 = vadd.f32 0.0, %v168
    %v170 = vpop.f32.mrf.mxu0
    %171 = vmatprep.mubr.bf16.mxu0 0
    %172 = vmatmul.mubr.bf16.gmra.mxu0 %v121
    %v173 = vpop.f32.mrf.mxu0
    %v174 = vadd.f32 0.0, %v173
    %v175 = vpop.f32.mrf.mxu0
    %v176 = vpop.f32.mrf.mxu0
    %v177 = vpop.f32.mrf.mxu0
    %178 = vdwg.mxu0
    %s179 = scalar_lea.vmem [#allocation6], 32
    %v180 = vld [vmem:[%s179] sm:$0xf]
    %v181 = vld [vmem:[%s179 + $0x4] sm:$0xf]
    %v182 = vld [vmem:[%s179 + $0x8] sm:$0xf]
    %v183 = vld [vmem:[%s179 + $0xc] sm:$0xf]
    %v184 = vld [vmem:[%s179 + $0x10] sm:$0xf]
    %v185 = vld [vmem:[%s179 + $0x14] sm:$0xf]
    %v186 = vld [vmem:[%s179 + $0x18] sm:$0xf]
    %v187 = vld [vmem:[%s179 + $0x1c] sm:$0xf]
    %v196 = vunpack.c.l.b16 %v180
    %v197 = vunpack.c.l.b16 %v181
    %v198 = vunpack.c.l.b16 %v182
    %v199 = vunpack.c.l.b16 %v183
    %v200 = vunpack.c.l.b16 %v184
    %v201 = vunpack.c.l.b16 %v185
    %v202 = vunpack.c.l.b16 %v186
    %v203 = vunpack.c.l.b16 %v187
    %v204 = vpack.c.b16 %v197, %v196
    %v205 = vpack.c.b16 %v199, %v198
    %v206 = vpack.c.b16 %v201, %v200
    %v207 = vpack.c.b16 %v203, %v202
    %212 = vmatprep.subr.bf16.mxu0 0
    %213 = vmatpush1.bf16.msra.mxu0 0
    %214 = vmatprep.subr.bf16.mxu0 0
    %215 = vmatpush1.bf16.msra.mxu0 0
    %216 = vmatprep.subr.bf16.mxu0 0
    %217 = vmatpush1.bf16.msra.mxu0 0
    %218 = vmatprep.subr.bf16.mxu0 0
    %219 = vmatpush1.bf16.msra.mxu0 0
    %220 = vmatprep.subr.bf16.mxu0 0
    %221 = vmatpush1.bf16.msra.mxu0 %v207
    %222 = vmatprep.subr.bf16.mxu0 0
    %223 = vmatpush1.bf16.msra.mxu0 %v206
    %224 = vmatprep.subr.bf16.mxu0 0
    %225 = vmatpush1.bf16.msra.mxu0 %v205
    %226 = vmatprep.subr.bf16.mxu0 0
    %227 = vmatpush1.bf16.msra.mxu0 %v204
    %228 = vmatprep.subr.bf16.mxu0 0
    %229 = vmatpush2.bf16.msra.mxu0 0
    %230 = vmatprep.subr.bf16.mxu0 0
    %231 = vmatpush2.bf16.msra.mxu0 0
    %232 = vmatprep.subr.bf16.mxu0 0
    %233 = vmatpush2.bf16.msra.mxu0 0
    %234 = vmatprep.subr.bf16.mxu0 0
    %235 = vmatpush2.bf16.msra.mxu0 0
    %236 = vmatprep.subr.bf16.mxu0 0
    %237 = vmatpush2.bf16.msra.mxu0 0
    %238 = vmatprep.subr.bf16.mxu0 0
    %239 = vmatpush2.bf16.msra.mxu0 0
    %240 = vmatprep.subr.bf16.mxu0 0
    %241 = vmatpush2.bf16.msra.mxu0 0
    %242 = vmatprep.subr.bf16.mxu0 0
    %243 = vmatpush2.bf16.msra.mxu0 0
    %244 = vmatprep.mubr.bf16.mxu0 0
    %245 = vmatmul.mubr.bf16.gmra.mxu0 %v115
    %v246 = vpop.f32.mrf.mxu0
    %v247 = vadd.f32 0.0, %v246
    %v248 = vpop.f32.mrf.mxu0
    %v249 = vpop.f32.mrf.mxu0
    %v250 = vadd.f32 0.0, %v249
    %v251 = vpop.f32.mrf.mxu0
    %252 = vmatprep.mubr.bf16.mxu0 0
    %253 = vmatmul.mubr.bf16.gmra.mxu0 %v118
    %v254 = vpop.f32.mrf.mxu0
    %v255 = vadd.f32 0.0, %v254
    %v256 = vpop.f32.mrf.mxu0
    %v257 = vpop.f32.mrf.mxu0
    %v258 = vadd.f32 0.0, %v257
    %v259 = vpop.f32.mrf.mxu0
    %260 = vmatprep.mubr.bf16.mxu0 0
    %261 = vmatmul.mubr.bf16.gmra.mxu0 %v121
    %v262 = vpop.f32.mrf.mxu0
    %v263 = vadd.f32 0.0, %v262
    %v264 = vpop.f32.mrf.mxu0
    %v265 = vpop.f32.mrf.mxu0
    %v266 = vpop.f32.mrf.mxu0
    %267 = vdwg.mxu0
    %vm273 = vcmask 1046528
    %v274 = vrot.slane %v247, 1
    %v275 = vrot.slane %v250, 1
    %v276 = vsel %vm273, %v274, %v275
    %v277 = vrot.slane %v255, 1
    %v278 = vsel %vm273, %v275, %v277
    %v279 = vrot.slane %v258, 1
    %v280 = vsel %vm273, %v277, %v279
    %v281 = vrot.slane %v263, 1
    %v282 = vsel %vm273, %v279, %v281
    %v288 = vadd.f32 %v158, %v276
    %v289 = vadd.f32 %v161, %v278
    %v290 = vadd.f32 %v166, %v280
    %v291 = vadd.f32 %v169, %v282
    %v292 = vadd.f32 %v174, %v281
    %s293 = scalar_lea.vmem [#allocation6], 64
    %v294 = vld [vmem:[%s293] sm:$0xf]
    %v295 = vld [vmem:[%s293 + $0x4] sm:$0xf]
    %v296 = vld [vmem:[%s293 + $0x8] sm:$0xf]
    %v297 = vld [vmem:[%s293 + $0xc] sm:$0xf]
    %v298 = vld [vmem:[%s293 + $0x10] sm:$0xf]
    %v299 = vld [vmem:[%s293 + $0x14] sm:$0xf]
    %v300 = vld [vmem:[%s293 + $0x18] sm:$0xf]
    %v301 = vld [vmem:[%s293 + $0x1c] sm:$0xf]
    %v310 = vunpack.c.l.b16 %v294
    %v311 = vunpack.c.l.b16 %v295
    %v312 = vunpack.c.l.b16 %v296
    %v313 = vunpack.c.l.b16 %v297
    %v314 = vunpack.c.l.b16 %v298
    %v315 = vunpack.c.l.b16 %v299
    %v316 = vunpack.c.l.b16 %v300
    %v317 = vunpack.c.l.b16 %v301
    %v318 = vpack.c.b16 %v311, %v310
    %v319 = vpack.c.b16 %v313, %v312
    %v320 = vpack.c.b16 %v315, %v314
    %v321 = vpack.c.b16 %v317, %v316
    %326 = vmatprep.subr.bf16.mxu0 0
    %327 = vmatpush1.bf16.msra.mxu0 0
    %328 = vmatprep.subr.bf16.mxu0 0
    %329 = vmatpush1.bf16.msra.mxu0 0
    %330 = vmatprep.subr.bf16.mxu0 0
    %331 = vmatpush1.bf16.msra.mxu0 0
    %332 = vmatprep.subr.bf16.mxu0 0
    %333 = vmatpush1.bf16.msra.mxu0 0
    %334 = vmatprep.subr.bf16.mxu0 0
    %335 = vmatpush1.bf16.msra.mxu0 %v321
    %336 = vmatprep.subr.bf16.mxu0 0
    %337 = vmatpush1.bf16.msra.mxu0 %v320
    %338 = vmatprep.subr.bf16.mxu0 0
    %339 = vmatpush1.bf16.msra.mxu0 %v319
    %340 = vmatprep.subr.bf16.mxu0 0
    %341 = vmatpush1.bf16.msra.mxu0 %v318
    %342 = vmatprep.subr.bf16.mxu0 0
    %343 = vmatpush2.bf16.msra.mxu0 0
    %344 = vmatprep.subr.bf16.mxu0 0
    %345 = vmatpush2.bf16.msra.mxu0 0
    %346 = vmatprep.subr.bf16.mxu0 0
    %347 = vmatpush2.bf16.msra.mxu0 0
    %348 = vmatprep.subr.bf16.mxu0 0
    %349 = vmatpush2.bf16.msra.mxu0 0
    %350 = vmatprep.subr.bf16.mxu0 0
    %351 = vmatpush2.bf16.msra.mxu0 0
    %352 = vmatprep.subr.bf16.mxu0 0
    %353 = vmatpush2.bf16.msra.mxu0 0
    %354 = vmatprep.subr.bf16.mxu0 0
    %355 = vmatpush2.bf16.msra.mxu0 0
    %356 = vmatprep.subr.bf16.mxu0 0
    %357 = vmatpush2.bf16.msra.mxu0 0
    %358 = vmatprep.mubr.bf16.mxu0 0
    %359 = vmatmul.mubr.bf16.gmra.mxu0 %v115
    %v360 = vpop.f32.mrf.mxu0
    %v361 = vadd.f32 0.0, %v360
    %v362 = vpop.f32.mrf.mxu0
    %v363 = vpop.f32.mrf.mxu0
    %v364 = vadd.f32 0.0, %v363
    %v365 = vpop.f32.mrf.mxu0
    %366 = vmatprep.mubr.bf16.mxu0 0
    %367 = vmatmul.mubr.bf16.gmra.mxu0 %v118
    %v368 = vpop.f32.mrf.mxu0
    %v369 = vadd.f32 0.0, %v368
    %v370 = vpop.f32.mrf.mxu0
    %v371 = vpop.f32.mrf.mxu0
    %v372 = vadd.f32 0.0, %v371
    %v373 = vpop.f32.mrf.mxu0
    %374 = vmatprep.mubr.bf16.mxu0 0
    %375 = vmatmul.mubr.bf16.gmra.mxu0 %v121
    %v376 = vpop.f32.mrf.mxu0
    %v377 = vadd.f32 0.0, %v376
    %v378 = vpop.f32.mrf.mxu0
    %v379 = vpop.f32.mrf.mxu0
    %v380 = vpop.f32.mrf.mxu0
    %381 = vdwg.mxu0
    %vm387 = vcmask 1045504
    %v388 = vrot.slane %v361, 2
    %v389 = vrot.slane %v364, 2
    %v390 = vsel %vm387, %v388, %v389
    %v391 = vrot.slane %v369, 2
    %v392 = vsel %vm387, %v389, %v391
    %v393 = vrot.slane %v372, 2
    %v394 = vsel %vm387, %v391, %v393
    %v395 = vrot.slane %v377, 2
    %v396 = vsel %vm387, %v393, %v395
    %v402 = vadd.f32 %v288, %v390
    %v403 = vadd.f32 %v289, %v392
    %v404 = vadd.f32 %v290, %v394
    %v405 = vadd.f32 %v291, %v396
    %v406 = vadd.f32 %v292, %v395
    %v407 = vld [vmem:[%s2] sm:$0x1]
    %v409 = vlaneseq
    %v410 = vshrl.u32 %v409, 7
    %v411 = vsub.s32 0, %v410
    %v412 = vrot.slane %v407, %v411
    %v414 = vadd.f32 %v402, %v412
    %v415 = vadd.f32 %v403, %v412
    %v416 = vadd.f32 %v404, %v412
    %v417 = vadd.f32 %v405, %v412
    %v418 = vadd.f32 %v406, %v412
    %v419 = vmax.f32 %v414, 0.0
    %v420 = vmax.f32 %v415, 0.0
    %v421 = vmax.f32 %v416, 0.0
    %v422 = vmax.f32 %v417, 0.0
    %v423 = vmax.f32 %v418, 0.0
    %424 = vst [vmem:[#allocation2 + $0x1] sm:$0xff] %v419
    %425 = vst [vmem:[#allocation2 + $0x9] sm:$0xff] %v420
    %426 = vst [vmem:[#allocation2 + $0x11] sm:$0xff] %v421
    %427 = vst [vmem:[#allocation2 + $0x19] sm:$0xff] %v422
    %428 = vst [vmem:[#allocation2 + $0x21] sm:$0x3] %v423
    %429 = vst [vmem:[#allocation2] sm:$0x1] 0.0
    %430 = vst [vmem:[#allocation2 + $0x11] sm:$0x3] 0.0
    %431 = vst [vmem:[#allocation2 + $0x23] sm:$0x1] 0.0
    %v432 = vld [vmem:[#allocation2] sm:$0xff]
    %v433 = vld [vmem:[#allocation2 + $0x8] sm:$0xff]
    %v434 = vld [vmem:[#allocation2 + $0x10] sm:$0xff]
    %v435 = vld [vmem:[#allocation2 + $0x18] sm:$0xff]
    %v436 = vld [vmem:[#allocation2 + $0x20] sm:$0xf]
    %v437 = vpack.c.bf16 %v433, %v432
    %v438 = vpack.c.bf16 %v435, %v434
    %v439 = vpack.c.bf16 %v436, %v436
    %v440 = vld [vmem:[#allocation8] sm:$0xf]
    %v441 = vld [vmem:[#allocation8 + $0x4] sm:$0xf]
    %v442 = vld [vmem:[#allocation8 + $0x8] sm:$0xf]
    %v443 = vld [vmem:[#allocation8 + $0xc] sm:$0xf]
    %v444 = vld [vmem:[#allocation8 + $0x10] sm:$0xf]
    %v445 = vld [vmem:[#allocation8 + $0x14] sm:$0xf]
    %v446 = vld [vmem:[#allocation8 + $0x18] sm:$0xf]
    %v447 = vld [vmem:[#allocation8 + $0x1c] sm:$0xf]
    %v448 = vld [vmem:[#allocation8 + $0x20] sm:$0xf]
    %v449 = vld [vmem:[#allocation8 + $0x24] sm:$0xf]
    %v450 = vld [vmem:[#allocation8 + $0x28] sm:$0xf]
    %v451 = vld [vmem:[#allocation8 + $0x2c] sm:$0xf]
    %v452 = vld [vmem:[#allocation8 + $0x30] sm:$0xf]
    %v453 = vld [vmem:[#allocation8 + $0x34] sm:$0xf]
    %v454 = vld [vmem:[#allocation8 + $0x38] sm:$0xf]
    %v455 = vld [vmem:[#allocation8 + $0x3c] sm:$0xf]
    %v472 = vunpack.c.l.b16 %v440
    %v473 = vunpack.c.l.b16 %v441
    %v474 = vunpack.c.l.b16 %v442
    %v475 = vunpack.c.l.b16 %v443
    %v476 = vunpack.c.l.b16 %v444
    %v477 = vunpack.c.l.b16 %v445
    %v478 = vunpack.c.l.b16 %v446
    %v479 = vunpack.c.l.b16 %v447
    %v480 = vunpack.c.l.b16 %v448
    %v481 = vunpack.c.l.b16 %v449
    %v482 = vunpack.c.l.b16 %v450
    %v483 = vunpack.c.l.b16 %v451
    %v484 = vunpack.c.l.b16 %v452
    %v485 = vunpack.c.l.b16 %v453
    %v486 = vunpack.c.l.b16 %v454
    %v487 = vunpack.c.l.b16 %v455
    %v488 = vpack.c.b16 %v473, %v472
    %v489 = vpack.c.b16 %v475, %v474
    %v490 = vpack.c.b16 %v477, %v476
    %v491 = vpack.c.b16 %v479, %v478
    %v492 = vpack.c.b16 %v481, %v480
    %v493 = vpack.c.b16 %v483, %v482
    %v494 = vpack.c.b16 %v485, %v484
    %v495 = vpack.c.b16 %v487, %v486
    %504 = vmatprep.subr.bf16.mxu0 0
    %505 = vmatpush1.bf16.msra.mxu0 %v495
    %506 = vmatprep.subr.bf16.mxu0 0
    %507 = vmatpush1.bf16.msra.mxu0 %v494
    %508 = vmatprep.subr.bf16.mxu0 0
    %509 = vmatpush1.bf16.msra.mxu0 %v493
    %510 = vmatprep.subr.bf16.mxu0 0
    %511 = vmatpush1.bf16.msra.mxu0 %v492
    %512 = vmatprep.subr.bf16.mxu0 0
    %513 = vmatpush1.bf16.msra.mxu0 %v491
    %514 = vmatprep.subr.bf16.mxu0 0
    %515 = vmatpush1.bf16.msra.mxu0 %v490
    %516 = vmatprep.subr.bf16.mxu0 0
    %517 = vmatpush1.bf16.msra.mxu0 %v489
    %518 = vmatprep.subr.bf16.mxu0 0
    %519 = vmatpush1.bf16.msra.mxu0 %v488
    %520 = vmatprep.subr.bf16.mxu0 0
    %521 = vmatpush2.bf16.msra.mxu0 0
    %522 = vmatprep.subr.bf16.mxu0 0
    %523 = vmatpush2.bf16.msra.mxu0 0
    %524 = vmatprep.subr.bf16.mxu0 0
    %525 = vmatpush2.bf16.msra.mxu0 0
    %526 = vmatprep.subr.bf16.mxu0 0
    %527 = vmatpush2.bf16.msra.mxu0 0
    %528 = vmatprep.subr.bf16.mxu0 0
    %529 = vmatpush2.bf16.msra.mxu0 0
    %530 = vmatprep.subr.bf16.mxu0 0
    %531 = vmatpush2.bf16.msra.mxu0 0
    %532 = vmatprep.subr.bf16.mxu0 0
    %533 = vmatpush2.bf16.msra.mxu0 0
    %534 = vmatprep.subr.bf16.mxu0 0
    %535 = vmatpush2.bf16.msra.mxu0 0
    %536 = vmatprep.mubr.bf16.mxu0 0
    %537 = vmatmul.mubr.bf16.gmra.mxu0 %v437
    %v538 = vpop.f32.mrf.mxu0
    %v539 = vadd.f32 0.0, %v538
    %v540 = vpop.f32.mrf.mxu0
    %v541 = vpop.f32.mrf.mxu0
    %v542 = vadd.f32 0.0, %v541
    %v543 = vpop.f32.mrf.mxu0
    %544 = vmatprep.mubr.bf16.mxu0 0
    %545 = vmatmul.mubr.bf16.gmra.mxu0 %v438
    %v546 = vpop.f32.mrf.mxu0
    %v547 = vadd.f32 0.0, %v546
    %v548 = vpop.f32.mrf.mxu0
    %v549 = vpop.f32.mrf.mxu0
    %v550 = vadd.f32 0.0, %v549
    %v551 = vpop.f32.mrf.mxu0
    %552 = vmatprep.mubr.bf16.mxu0 0
    %553 = vmatmul.mubr.bf16.gmra.mxu0 %v439
    %v554 = vpop.f32.mrf.mxu0
    %v555 = vadd.f32 0.0, %v554
    %v556 = vpop.f32.mrf.mxu0
    %v557 = vpop.f32.mrf.mxu0
    %v558 = vpop.f32.mrf.mxu0
    %559 = vdwg.mxu0
    %s560 = scalar_lea.vmem [#allocation8], 64
    %v561 = vld [vmem:[%s560] sm:$0xf]
    %v562 = vld [vmem:[%s560 + $0x4] sm:$0xf]
    %v563 = vld [vmem:[%s560 + $0x8] sm:$0xf]
    %v564 = vld [vmem:[%s560 + $0xc] sm:$0xf]
    %v565 = vld [vmem:[%s560 + $0x10] sm:$0xf]
    %v566 = vld [vmem:[%s560 + $0x14] sm:$0xf]
    %v567 = vld [vmem:[%s560 + $0x18] sm:$0xf]
    %v568 = vld [vmem:[%s560 + $0x1c] sm:$0xf]
    %v569 = vld [vmem:[%s560 + $0x20] sm:$0xf]
    %v570 = vld [vmem:[%s560 + $0x24] sm:$0xf]
    %v571 = vld [vmem:[%s560 + $0x28] sm:$0xf]
    %v572 = vld [vmem:[%s560 + $0x2c] sm:$0xf]
    %v573 = vld [vmem:[%s560 + $0x30] sm:$0xf]
    %v574 = vld [vmem:[%s560 + $0x34] sm:$0xf]
    %v575 = vld [vmem:[%s560 + $0x38] sm:$0xf]
    %v576 = vld [vmem:[%s560 + $0x3c] sm:$0xf]
    %v593 = vunpack.c.l.b16 %v561
    %v594 = vunpack.c.l.b16 %v562
    %v595 = vunpack.c.l.b16 %v563
    %v596 = vunpack.c.l.b16 %v564
    %v597 = vunpack.c.l.b16 %v565
    %v598 = vunpack.c.l.b16 %v566
    %v599 = vunpack.c.l.b16 %v567
    %v600 = vunpack.c.l.b16 %v568
    %v601 = vunpack.c.l.b16 %v569
    %v602 = vunpack.c.l.b16 %v570
    %v603 = vunpack.c.l.b16 %v571
    %v604 = vunpack.c.l.b16 %v572
    %v605 = vunpack.c.l.b16 %v573
    %v606 = vunpack.c.l.b16 %v574
    %v607 = vunpack.c.l.b16 %v575
    %v608 = vunpack.c.l.b16 %v576
    %v609 = vpack.c.b16 %v594, %v593
    %v610 = vpack.c.b16 %v596, %v595
    %v611 = vpack.c.b16 %v598, %v597
    %v612 = vpack.c.b16 %v600, %v599
    %v613 = vpack.c.b16 %v602, %v601
    %v614 = vpack.c.b16 %v604, %v603
    %v615 = vpack.c.b16 %v606, %v605
    %v616 = vpack.c.b16 %v608, %v607
    %625 = vmatprep.subr.bf16.mxu0 0
    %626 = vmatpush1.bf16.msra.mxu0 %v616
    %627 = vmatprep.subr.bf16.mxu0 0
    %628 = vmatpush1.bf16.msra.mxu0 %v615
    %629 = vmatprep.subr.bf16.mxu0 0
    %630 = vmatpush1.bf16.msra.mxu0 %v614
    %631 = vmatprep.subr.bf16.mxu0 0
    %632 = vmatpush1.bf16.msra.mxu0 %v613
    %633 = vmatprep.subr.bf16.mxu0 0
    %634 = vmatpush1.bf16.msra.mxu0 %v612
    %635 = vmatprep.subr.bf16.mxu0 0
    %636 = vmatpush1.bf16.msra.mxu0 %v611
    %637 = vmatprep.subr.bf16.mxu0 0
    %638 = vmatpush1.bf16.msra.mxu0 %v610
    %639 = vmatprep.subr.bf16.mxu0 0
    %640 = vmatpush1.bf16.msra.mxu0 %v609
    %641 = vmatprep.subr.bf16.mxu0 0
    %642 = vmatpush2.bf16.msra.mxu0 0
    %643 = vmatprep.subr.bf16.mxu0 0
    %644 = vmatpush2.bf16.msra.mxu0 0
    %645 = vmatprep.subr.bf16.mxu0 0
    %646 = vmatpush2.bf16.msra.mxu0 0
    %647 = vmatprep.subr.bf16.mxu0 0
    %648 = vmatpush2.bf16.msra.mxu0 0
    %649 = vmatprep.subr.bf16.mxu0 0
    %650 = vmatpush2.bf16.msra.mxu0 0
    %651 = vmatprep.subr.bf16.mxu0 0
    %652 = vmatpush2.bf16.msra.mxu0 0
    %653 = vmatprep.subr.bf16.mxu0 0
    %654 = vmatpush2.bf16.msra.mxu0 0
    %655 = vmatprep.subr.bf16.mxu0 0
    %656 = vmatpush2.bf16.msra.mxu0 0
    %657 = vmatprep.mubr.bf16.mxu0 0
    %658 = vmatmul.mubr.bf16.gmra.mxu0 %v437
    %v659 = vpop.f32.mrf.mxu0
    %v660 = vadd.f32 0.0, %v659
    %v661 = vpop.f32.mrf.mxu0
    %v662 = vpop.f32.mrf.mxu0
    %v663 = vadd.f32 0.0, %v662
    %v664 = vpop.f32.mrf.mxu0
    %665 = vmatprep.mubr.bf16.mxu0 0
    %666 = vmatmul.mubr.bf16.gmra.mxu0 %v438
    %v667 = vpop.f32.mrf.mxu0
    %v668 = vadd.f32 0.0, %v667
    %v669 = vpop.f32.mrf.mxu0
    %v670 = vpop.f32.mrf.mxu0
    %v671 = vadd.f32 0.0, %v670
    %v672 = vpop.f32.mrf.mxu0
    %673 = vmatprep.mubr.bf16.mxu0 0
    %674 = vmatmul.mubr.bf16.gmra.mxu0 %v439
    %v675 = vpop.f32.mrf.mxu0
    %v676 = vadd.f32 0.0, %v675
    %v677 = vpop.f32.mrf.mxu0
    %v678 = vpop.f32.mrf.mxu0
    %v679 = vpop.f32.mrf.mxu0
    %680 = vdwg.mxu0
    %v686 = vrot.slane %v660, 1
    %v687 = vrot.slane %v663, 1
    %v688 = vsel %vm273, %v686, %v687
    %v689 = vrot.slane %v668, 1
    %v690 = vsel %vm273, %v687, %v689
    %v691 = vrot.slane %v671, 1
    %v692 = vsel %vm273, %v689, %v691
    %v693 = vrot.slane %v676, 1
    %v694 = vsel %vm273, %v691, %v693
    %v700 = vadd.f32 %v539, %v688
    %v701 = vadd.f32 %v542, %v690
    %v702 = vadd.f32 %v547, %v692
    %v703 = vadd.f32 %v550, %v694
    %v704 = vadd.f32 %v555, %v693
    %s705 = scalar_lea.vmem [#allocation8], 128
    %v706 = vld [vmem:[%s705] sm:$0xf]
    %v707 = vld [vmem:[%s705 + $0x4] sm:$0xf]
    %v708 = vld [vmem:[%s705 + $0x8] sm:$0xf]
    %v709 = vld [vmem:[%s705 + $0xc] sm:$0xf]
    %v710 = vld [vmem:[%s705 + $0x10] sm:$0xf]
    %v711 = vld [vmem:[%s705 + $0x14] sm:$0xf]
    %v712 = vld [vmem:[%s705 + $0x18] sm:$0xf]
    %v713 = vld [vmem:[%s705 + $0x1c] sm:$0xf]
    %v714 = vld [vmem:[%s705 + $0x20] sm:$0xf]
    %v715 = vld [vmem:[%s705 + $0x24] sm:$0xf]
    %v716 = vld [vmem:[%s705 + $0x28] sm:$0xf]
    %v717 = vld [vmem:[%s705 + $0x2c] sm:$0xf]
    %v718 = vld [vmem:[%s705 + $0x30] sm:$0xf]
    %v719 = vld [vmem:[%s705 + $0x34] sm:$0xf]
    %v720 = vld [vmem:[%s705 + $0x38] sm:$0xf]
    %v721 = vld [vmem:[%s705 + $0x3c] sm:$0xf]
    %v738 = vunpack.c.l.b16 %v706
    %v739 = vunpack.c.l.b16 %v707
    %v740 = vunpack.c.l.b16 %v708
    %v741 = vunpack.c.l.b16 %v709
    %v742 = vunpack.c.l.b16 %v710
    %v743 = vunpack.c.l.b16 %v711
    %v744 = vunpack.c.l.b16 %v712
    %v745 = vunpack.c.l.b16 %v713
    %v746 = vunpack.c.l.b16 %v714
    %v747 = vunpack.c.l.b16 %v715
    %v748 = vunpack.c.l.b16 %v716
    %v749 = vunpack.c.l.b16 %v717
    %v750 = vunpack.c.l.b16 %v718
    %v751 = vunpack.c.l.b16 %v719
    %v752 = vunpack.c.l.b16 %v720
    %v753 = vunpack.c.l.b16 %v721
    %v754 = vpack.c.b16 %v739, %v738
    %v755 = vpack.c.b16 %v741, %v740
    %v756 = vpack.c.b16 %v743, %v742
    %v757 = vpack.c.b16 %v745, %v744
    %v758 = vpack.c.b16 %v747, %v746
    %v759 = vpack.c.b16 %v749, %v748
    %v760 = vpack.c.b16 %v751, %v750
    %v761 = vpack.c.b16 %v753, %v752
    %770 = vmatprep.subr.bf16.mxu0 0
    %771 = vmatpush1.bf16.msra.mxu0 %v761
    %772 = vmatprep.subr.bf16.mxu0 0
    %773 = vmatpush1.bf16.msra.mxu0 %v760
    %774 = vmatprep.subr.bf16.mxu0 0
    %775 = vmatpush1.bf16.msra.mxu0 %v759
    %776 = vmatprep.subr.bf16.mxu0 0
    %777 = vmatpush1.bf16.msra.mxu0 %v758
    %778 = vmatprep.subr.bf16.mxu0 0
    %779 = vmatpush1.bf16.msra.mxu0 %v757
    %780 = vmatprep.subr.bf16.mxu0 0
    %781 = vmatpush1.bf16.msra.mxu0 %v756
    %782 = vmatprep.subr.bf16.mxu0 0
    %783 = vmatpush1.bf16.msra.mxu0 %v755
    %784 = vmatprep.subr.bf16.mxu0 0
    %785 = vmatpush1.bf16.msra.mxu0 %v754
    %786 = vmatprep.subr.bf16.mxu0 0
    %787 = vmatpush2.bf16.msra.mxu0 0
    %788 = vmatprep.subr.bf16.mxu0 0
    %789 = vmatpush2.bf16.msra.mxu0 0
    %790 = vmatprep.subr.bf16.mxu0 0
    %791 = vmatpush2.bf16.msra.mxu0 0
    %792 = vmatprep.subr.bf16.mxu0 0
    %793 = vmatpush2.bf16.msra.mxu0 0
    %794 = vmatprep.subr.bf16.mxu0 0
    %795 = vmatpush2.bf16.msra.mxu0 0
    %796 = vmatprep.subr.bf16.mxu0 0
    %797 = vmatpush2.bf16.msra.mxu0 0
    %798 = vmatprep.subr.bf16.mxu0 0
    %799 = vmatpush2.bf16.msra.mxu0 0
    %800 = vmatprep.subr.bf16.mxu0 0
    %801 = vmatpush2.bf16.msra.mxu0 0
    %802 = vmatprep.mubr.bf16.mxu0 0
    %803 = vmatmul.mubr.bf16.gmra.mxu0 %v437
    %v804 = vpop.f32.mrf.mxu0
    %v805 = vadd.f32 0.0, %v804
    %v806 = vpop.f32.mrf.mxu0
    %v807 = vpop.f32.mrf.mxu0
    %v808 = vadd.f32 0.0, %v807
    %v809 = vpop.f32.mrf.mxu0
    %810 = vmatprep.mubr.bf16.mxu0 0
    %811 = vmatmul.mubr.bf16.gmra.mxu0 %v438
    %v812 = vpop.f32.mrf.mxu0
    %v813 = vadd.f32 0.0, %v812
    %v814 = vpop.f32.mrf.mxu0
    %v815 = vpop.f32.mrf.mxu0
    %v816 = vadd.f32 0.0, %v815
    %v817 = vpop.f32.mrf.mxu0
    %818 = vmatprep.mubr.bf16.mxu0 0
    %819 = vmatmul.mubr.bf16.gmra.mxu0 %v439
    %v820 = vpop.f32.mrf.mxu0
    %v821 = vadd.f32 0.0, %v820
    %v822 = vpop.f32.mrf.mxu0
    %v823 = vpop.f32.mrf.mxu0
    %v824 = vpop.f32.mrf.mxu0
    %825 = vdwg.mxu0
    %v831 = vrot.slane %v805, 2
    %v832 = vrot.slane %v808, 2
    %v833 = vsel %vm387, %v831, %v832
    %v834 = vrot.slane %v813, 2
    %v835 = vsel %vm387, %v832, %v834
    %v836 = vrot.slane %v816, 2
    %v837 = vsel %vm387, %v834, %v836
    %v838 = vrot.slane %v821, 2
    %v839 = vsel %vm387, %v836, %v838
    %v845 = vadd.f32 %v700, %v833
    %v846 = vadd.f32 %v701, %v835
    %v847 = vadd.f32 %v702, %v837
    %v848 = vadd.f32 %v703, %v839
    %v849 = vadd.f32 %v704, %v838
    %v850 = vld [vmem:[%s4] sm:$0x1]
    %v852 = vlaneseq
    %v853 = vshrl.u32 %v852, 7
    %v854 = vsub.s32 0, %v853
    %v855 = vrot.slane %v850, %v854
    %v857 = vadd.f32 %v845, %v855
    %v858 = vadd.f32 %v846, %v855
    %v859 = vadd.f32 %v847, %v855
    %v860 = vadd.f32 %v848, %v855
    %v861 = vadd.f32 %v849, %v855
    %v862 = vmax.f32 %v857, 0.0
    %v863 = vmax.f32 %v858, 0.0
    %v864 = vmax.f32 %v859, 0.0
    %v865 = vmax.f32 %v860, 0.0
    %v866 = vmax.f32 %v861, 0.0
    %867 = vst [vmem:[#allocation9] sm:$0xff] %v862
    %868 = vst [vmem:[#allocation9 + $0x8] sm:$0xff] %v863
    %s869 = scalar_lea.vmem [#allocation9], 16
    %870 = vst [vmem:[%s869 - $0x2] sm:$0xfc] %v864
    %871 = vst [vmem:[%s869 + $0x6] sm:$0xff] %v865
    %872 = vst [vmem:[%s869 + $0xe] sm:$0x3] %v866
    // Predicated region
    $region34: #{tpu_custom_call.1} parent=1 // pred_check
      _
    $region35: #{tpu_custom_call.1} parent=1 // pred_check_branch
      %874 = sbr.rel (0) target = $region37
    $region36: #{tpu_custom_call.1} parent=1 // pred_region
      %s876 = ssub.s32 512, 512
      %877 = vsyncadd [#allocation5], %s876
      %s878 = sshll.u32 [#allocation9], 4
      %s879 = int_to_ptr.vmem [resolvable:$true] %s878
      %884 = dma.vmem_to_hbm [thread:$0]  %s879, 512, %s5, [#allocation5], 128, 128, 8
    $region37: #{tpu_custom_call.1} parent=1 // pred_fallthru
      _
    // Predicated region
    $region38: #{tpu_custom_call.1} parent=1 // pred_check
      _
    $region39: #{tpu_custom_call.1} parent=1 // pred_check_branch
      %886 = sbr.rel (0) target = $region41
    $region40: #{tpu_custom_call.1} parent=1 // pred_region
      %887 = dma.done [#allocation5], 512
    $region41: #{tpu_custom_call.1} parent=1 // pred_fallthru
      _
    %888 = vsyncpa [#allocation4], 1
    %889 = vsyncpa [#allocation7], 1
    %890 = vsyncpa [#allocation5], 1

</llo_original>
